<compile_context>
chip_gen: v5e
topology: v5e:2x2
jax: 0.10.0
libtpu: 0.0.40
codegen_flags: <defaults>
</compile_context>

<pallas_src>
import jax
import jax.numpy as jnp
from jax.experimental import pallas as pl
from jax.experimental.pallas import tpu as pltpu


def _round_up(n, m):
    return ((n + m - 1) // m) * m


def _mlp_kernel(x_ref,
                w1_ref, t1_ref,
                w2_ref, t2_ref,
                w3_ref, t3_ref,
                w4_ref, b4_ref,
                out_ref):
    # fc1 -> folded bn1 -> relu   (dropout = identity in eval mode)
    h = jnp.dot(x_ref[...], w1_ref[...], preferred_element_type=jnp.float32)
    h = jnp.maximum(h + t1_ref[...], 0.0)

    # fc2 -> folded bn2 -> relu
    h = jnp.dot(h.astype(w2_ref.dtype), w2_ref[...], preferred_element_type=jnp.float32)
    h = jnp.maximum(h + t2_ref[...], 0.0)

    # fc3 -> folded bn3 -> relu
    h = jnp.dot(h.astype(w3_ref.dtype), w3_ref[...], preferred_element_type=jnp.float32)
    h = jnp.maximum(h + t3_ref[...], 0.0)

    # fc4 (64 -> 1): VPU multiply + lane reduction (an N=1 MXU matmul would waste the MXU),
    # stored lane-dense as a (1, 1, TILE_B) row to avoid masked 1-lane stores.
    r = jnp.sum(h * w4_ref[...], axis=-1)                      # (TILE_B,)
    out_ref[...] = (r + b4_ref[0])[None, None, :].astype(out_ref.dtype)


def anime_recommender_forward(x, params, *, compute_dtype=jnp.bfloat16, tile_b=1024):
    """x: [B, emb_dim + num_features] float32. Returns [B, 1] float32 (eval-mode forward)."""
    B, d_in = x.shape

    (w1, b1, g1, be1, m1, v1,
     w2, b2, g2, be2, m2, v2,
     w3, b3, g3, be3, m3, v3,
     w4, b4) = params

    eps = 1e-5

    def fold_bn(w, bias, gamma, beta, mean, var):
        # gamma*(x@W + b - mean)/sqrt(var+eps) + beta == x@(W*scale) + shift
        scale = gamma / jnp.sqrt(var + eps)                      # (N,)
        w_folded = (w * scale[None, :]).astype(jnp.float32)      # fold scale into columns
        shift = (beta - mean * scale + bias * scale).reshape(1, -1).astype(jnp.float32)
        return w_folded, shift

    w1_f, t1 = fold_bn(w1, b1, g1, be1, m1, v1)
    w2_f, t2 = fold_bn(w2, b2, g2, be2, m2, v2)
    w3_f, t3 = fold_bn(w3, b3, g3, be3, m3, v3)

    # Lane-aligned feature dim; batch padded up to a tile multiple (no OOB, no tail tile).
    d_pad = _round_up(d_in, 128)
    tile_b = _round_up(tile_b, 128)
    tile_b = min(tile_b, _round_up(B, 128))
    b_pad = _round_up(B, tile_b)
    num_tiles = b_pad // tile_b

    x_p = jnp.zeros((b_pad, d_pad), compute_dtype).at[:B, :d_in].set(x.astype(compute_dtype))
    w1_p = jnp.zeros((d_pad, w1_f.shape[1]), compute_dtype).at[:d_in, :].set(
        w1_f.astype(compute_dtype))
    w2_c = w2_f.astype(compute_dtype)
    w3_c = w3_f.astype(compute_dtype)
    w4_row = w4.reshape(1, -1).astype(jnp.float32)   # (1, 64), applied on the VPU in f32
    b4_s = b4.reshape(1).astype(jnp.float32)

    args = (x_p,
            w1_p, t1,
            w2_c, t2,
            w3_c, t3,
            w4_row, b4_s)

    resident = pl.BlockSpec(memory_space=pltpu.VMEM)   # untiled; stays in VMEM across steps
    in_specs = [
        pl.BlockSpec((tile_b, d_pad), lambda i: (i, 0)),   # x: tiled over batch
        resident, resident,                                # w1, shift1
        resident, resident,                                # w2, shift2
        resident, resident,                                # w3, shift3
        resident,                                          # w4 row
        pl.BlockSpec(memory_space=pltpu.SMEM),             # b4 scalar
    ]
    out_specs = pl.BlockSpec((1, 1, tile_b), lambda i: (i, 0, 0))

    out = pl.pallas_call(
        _mlp_kernel,
        grid=(num_tiles,),
        in_specs=in_specs,
        out_specs=out_specs,
        out_shape=jax.ShapeDtypeStruct((num_tiles, 1, tile_b), jnp.float32),
        compiler_params=pltpu.CompilerParams(
            dimension_semantics=("parallel",),
            vmem_limit_bytes=32 * 1024 * 1024,
        ),
    )(*args)

    # Lane-dense slab -> (B, 1); pure layout plumbing on the host side.
    return out.reshape(-1)[:B].reshape(B, 1)


def init_params(key, emb_dim, num_features):
    """Deterministic init mimicking the PyTorch module's parameter shapes.

    Linear weights are stored transposed, i.e. (in, out), so the kernel does x @ W.
    BatchNorm1d params are randomized (rather than PyTorch defaults) so the BN folding
    is actually exercised by the numeric check.
    """
    d_in = emb_dim + num_features
    dims = [(d_in, 256), (256, 128), (128, 64), (64, 1)]

    params = []
    for i, (din, dout) in enumerate(dims):
        kw, kb, key = jax.random.split(key, 3)
        bound = 1.0 / jnp.sqrt(din)
        w = jax.random.uniform(kw, (din, dout), jnp.float32, -bound, bound)
        b = jax.random.uniform(kb, (dout,), jnp.float32, -bound, bound)
        params.extend([w, b])
        if i < 3:  # bn1, bn2, bn3
            kg, kbt, km, kv, key = jax.random.split(key, 5)
            params.extend([
                jax.random.uniform(kg, (dout,), jnp.float32, 0.5, 1.5),    # gamma
                0.1 * jax.random.normal(kbt, (dout,), jnp.float32),        # beta
                0.1 * jax.random.normal(km, (dout,), jnp.float32),         # running_mean
                jax.random.uniform(kv, (dout,), jnp.float32, 0.5, 1.5),    # running_var
            ])
    return tuple(params)


def reference_forward(x, params):
    """Pure-JAX reference (eval-mode BN, identity dropout), full fp32."""
    (w1, b1, g1, be1, m1, v1,
     w2, b2, g2, be2, m2, v2,
     w3, b3, g3, be3, m3, v3,
     w4, b4) = params
    eps = 1e-5

    def bn(h, g, be, m, v):
        return g * (h - m) / jnp.sqrt(v + eps) + be

    h = jax.nn.relu(bn(x @ w1 + b1, g1, be1, m1, v1))
    h = jax.nn.relu(bn(h @ w2 + b2, g2, be2, m2, v2))
    h = jax.nn.relu(bn(h @ w3 + b3, g3, be3, m3, v3))
    return h @ w4 + b4


if __name__ == "__main__":
    emb_dim = 24
    num_features = 8

    key = jax.random.PRNGKey(0)
    kx1, kx2, kp = jax.random.split(key, 3)
    params = init_params(kp, emb_dim, num_features)

    # 1) Small batch, fp32 MXU operands: tight check against the pure-JAX reference.
    x1 = jax.random.normal(kx1, (8, emb_dim + num_features), jnp.float32)
    out1 = jax.block_until_ready(
        anime_recommender_forward(x1, params, compute_dtype=jnp.float32))
    ref1 = reference_forward(x1, params)
    assert out1.shape == (8, 1), out1.shape
    assert jnp.allclose(out1, ref1, atol=1e-4, rtol=1e-4), float(jnp.max(jnp.abs(out1 - ref1)))

    # 2) Multi-tile grid with a non-multiple batch, bf16 MXU operands (looser tolerance).
    x2 = jax.random.normal(kx2, (300, emb_dim + num_features), jnp.float32)
    out2 = jax.block_until_ready(
        anime_recommender_forward(x2, params, compute_dtype=jnp.bfloat16, tile_b=128))
    ref2 = reference_forward(x2, params)
    assert out2.shape == (300, 1), out2.shape
    assert jnp.allclose(out2, ref2, atol=3e-2, rtol=3e-2), float(jnp.max(jnp.abs(out2 - ref2)))

    print("KERNEL_OK")
</pallas_src>

<mosaic_0001>
module attributes {stable_mosaic.version = 11 : i64} {
  func.func @_mlp_kernel(%arg0: i32, %arg1: memref<128x128xf32, #tpu.memory_space<vmem>>, %arg2: memref<128x256xf32, #tpu.memory_space<vmem>>, %arg3: memref<1x256xf32, #tpu.memory_space<vmem>>, %arg4: memref<256x128xf32, #tpu.memory_space<vmem>>, %arg5: memref<1x128xf32, #tpu.memory_space<vmem>>, %arg6: memref<128x64xf32, #tpu.memory_space<vmem>>, %arg7: memref<1x64xf32, #tpu.memory_space<vmem>>, %arg8: memref<1x64xf32, #tpu.memory_space<vmem>>, %arg9: memref<1xf32, #tpu.memory_space<smem>>, %arg10: memref<1x1x128xf32, #tpu.memory_space<vmem>>) attributes {dimension_semantics = [#tpu.dimension_semantics<parallel>], iteration_bounds = array<i64: 1>, scalar_prefetch = 0 : i64, scratch_operands = 0 : i64, tpu.core_type = #tpu.core_type<tc>, window_params = [{transform_indices = @transform_0, window_bounds = array<i64: 128, 128>}, {pipeline_mode = #tpu.pipeline_mode<synchronous>, transform_indices = @transform_1, window_bounds = array<i64: 128, 256>}, {pipeline_mode = #tpu.pipeline_mode<synchronous>, transform_indices = @transform_2, window_bounds = array<i64: 1, 256>}, {pipeline_mode = #tpu.pipeline_mode<synchronous>, transform_indices = @transform_3, window_bounds = array<i64: 256, 128>}, {pipeline_mode = #tpu.pipeline_mode<synchronous>, transform_indices = @transform_4, window_bounds = array<i64: 1, 128>}, {pipeline_mode = #tpu.pipeline_mode<synchronous>, transform_indices = @transform_5, window_bounds = array<i64: 128, 64>}, {pipeline_mode = #tpu.pipeline_mode<synchronous>, transform_indices = @transform_6, window_bounds = array<i64: 1, 64>}, {pipeline_mode = #tpu.pipeline_mode<synchronous>, transform_indices = @transform_7, window_bounds = array<i64: 1, 64>}, {transform_indices = @transform_8, window_bounds = array<i64: 1>}, {transform_indices = @transform_9, window_bounds = array<i64: 1, 1, 128>}]} {
    %c0 = arith.constant 0 : index
    %c0_0 = arith.constant 0 : index
    %0 = vector.load %arg1[%c0, %c0_0] : memref<128x128xf32, #tpu.memory_space<vmem>>, vector<128x128xf32>
    %c0_1 = arith.constant 0 : index
    %c0_2 = arith.constant 0 : index
    %1 = vector.load %arg2[%c0_1, %c0_2] : memref<128x256xf32, #tpu.memory_space<vmem>>, vector<128x256xf32>
    %cst = arith.constant dense<0.000000e+00> : vector<128x256xf32>
    %2 = tpu.matmul %0, %1, %cst {dimension_numbers = #tpu.dot_dimension_numbers<[1], [0], [0], [1], [0, 0, 1, 1], [], []>} : vector<128x128xf32>, vector<128x256xf32>, vector<128x256xf32> -> vector<128x256xf32>
    %c0_3 = arith.constant 0 : index
    %c0_4 = arith.constant 0 : index
    %3 = vector.load %arg3[%c0_3, %c0_4] : memref<1x256xf32, #tpu.memory_space<vmem>>, vector<1x256xf32>
    %4 = vector.broadcast %3 : vector<1x256xf32> to vector<128x256xf32>
    %5 = arith.addf %2, %4 : vector<128x256xf32>
    %cst_5 = arith.constant 0.000000e+00 : f32
    %6 = vector.broadcast %cst_5 : f32 to vector<128x256xf32>
    %7 = arith.maximumf %5, %6 : vector<128x256xf32>
    %c0_6 = arith.constant 0 : index
    %c0_7 = arith.constant 0 : index
    %8 = vector.load %arg4[%c0_6, %c0_7] : memref<256x128xf32, #tpu.memory_space<vmem>>, vector<256x128xf32>
    %cst_8 = arith.constant dense<0.000000e+00> : vector<128x128xf32>
    %9 = tpu.matmul %7, %8, %cst_8 {dimension_numbers = #tpu.dot_dimension_numbers<[1], [0], [0], [1], [0, 0, 1, 1], [], []>} : vector<128x256xf32>, vector<256x128xf32>, vector<128x128xf32> -> vector<128x128xf32>
    %c0_9 = arith.constant 0 : index
    %c0_10 = arith.constant 0 : index
    %10 = vector.load %arg5[%c0_9, %c0_10] : memref<1x128xf32, #tpu.memory_space<vmem>>, vector<1x128xf32>
    %11 = vector.broadcast %10 : vector<1x128xf32> to vector<128x128xf32>
    %12 = arith.addf %9, %11 : vector<128x128xf32>
    %cst_11 = arith.constant 0.000000e+00 : f32
    %13 = vector.broadcast %cst_11 : f32 to vector<128x128xf32>
    %14 = arith.maximumf %12, %13 : vector<128x128xf32>
    %c0_12 = arith.constant 0 : index
    %c0_13 = arith.constant 0 : index
    %15 = vector.load %arg6[%c0_12, %c0_13] : memref<128x64xf32, #tpu.memory_space<vmem>>, vector<128x64xf32>
    %cst_14 = arith.constant dense<0.000000e+00> : vector<128x64xf32>
    %16 = tpu.matmul %14, %15, %cst_14 {dimension_numbers = #tpu.dot_dimension_numbers<[1], [0], [0], [1], [0, 0, 1, 1], [], []>} : vector<128x128xf32>, vector<128x64xf32>, vector<128x64xf32> -> vector<128x64xf32>
    %c0_15 = arith.constant 0 : index
    %c0_16 = arith.constant 0 : index
    %17 = vector.load %arg7[%c0_15, %c0_16] : memref<1x64xf32, #tpu.memory_space<vmem>>, vector<1x64xf32>
    %18 = vector.broadcast %17 : vector<1x64xf32> to vector<128x64xf32>
    %19 = arith.addf %16, %18 : vector<128x64xf32>
    %cst_17 = arith.constant 0.000000e+00 : f32
    %20 = vector.broadcast %cst_17 : f32 to vector<128x64xf32>
    %21 = arith.maximumf %19, %20 : vector<128x64xf32>
    %c0_18 = arith.constant 0 : index
    %c0_19 = arith.constant 0 : index
    %22 = vector.load %arg8[%c0_18, %c0_19] : memref<1x64xf32, #tpu.memory_space<vmem>>, vector<1x64xf32>
    %23 = vector.broadcast %22 : vector<1x64xf32> to vector<128x64xf32>
    %24 = arith.mulf %21, %23 : vector<128x64xf32>
    %cst_20 = arith.constant dense<0.000000e+00> : vector<128xf32>
    %25 = vector.multi_reduction <add>, %24, %cst_20 [1] : vector<128x64xf32> to vector<128xf32>
    %c0_21 = arith.constant 0 : index
    %26 = memref.load %arg9[%c0_21] : memref<1xf32, #tpu.memory_space<smem>>
    %27 = vector.broadcast %26 : f32 to vector<128xf32>
    %28 = arith.addf %25, %27 : vector<128xf32>
    %29 = vector.shape_cast %28 : vector<128xf32> to vector<1x1x128xf32>
    %c0_22 = arith.constant 0 : index
    %c0_23 = arith.constant 0 : index
    %c0_24 = arith.constant 0 : index
    %30 = vector.load %arg10[%c0_22, %c0_23, %c0_24] : memref<1x1x128xf32, #tpu.memory_space<vmem>>, vector<1x1x128xf32>
    tpu.vector_store %arg10[%c0_22, %c0_23, %c0_24], %29 {strides = array<i32>} : memref<1x1x128xf32, #tpu.memory_space<vmem>>, vector<1x1x128xf32>,
    return
  }
  func.func @transform_0(%arg0: i32) -> (i32, i32) {
    %c0_i32 = arith.constant 0 : i32
    %c0_i32_0 = arith.constant 0 : i32
    return %arg0, %c0_i32 : i32, i32
  }
  func.func @transform_1(%arg0: i32) -> (i32, i32) {
    %c0_i32 = arith.constant 0 : i32
    %c0_i32_0 = arith.constant 0 : i32
    %c0_i32_1 = arith.constant 0 : i32
    return %c0_i32, %c0_i32_0 : i32, i32
  }
  func.func @transform_2(%arg0: i32) -> (i32, i32) {
    %c0_i32 = arith.constant 0 : i32
    %c0_i32_0 = arith.constant 0 : i32
    %c0_i32_1 = arith.constant 0 : i32
    return %c0_i32, %c0_i32_0 : i32, i32
  }
  func.func @transform_3(%arg0: i32) -> (i32, i32) {
    %c0_i32 = arith.constant 0 : i32
    %c0_i32_0 = arith.constant 0 : i32
    %c0_i32_1 = arith.constant 0 : i32
    return %c0_i32, %c0_i32_0 : i32, i32
  }
  func.func @transform_4(%arg0: i32) -> (i32, i32) {
    %c0_i32 = arith.constant 0 : i32
    %c0_i32_0 = arith.constant 0 : i32
    %c0_i32_1 = arith.constant 0 : i32
    return %c0_i32, %c0_i32_0 : i32, i32
  }
  func.func @transform_5(%arg0: i32) -> (i32, i32) {
    %c0_i32 = arith.constant 0 : i32
    %c0_i32_0 = arith.constant 0 : i32
    %c0_i32_1 = arith.constant 0 : i32
    return %c0_i32, %c0_i32_0 : i32, i32
  }
  func.func @transform_6(%arg0: i32) -> (i32, i32) {
    %c0_i32 = arith.constant 0 : i32
    %c0_i32_0 = arith.constant 0 : i32
    %c0_i32_1 = arith.constant 0 : i32
    return %c0_i32, %c0_i32_0 : i32, i32
  }
  func.func @transform_7(%arg0: i32) -> (i32, i32) {
    %c0_i32 = arith.constant 0 : i32
    %c0_i32_0 = arith.constant 0 : i32
    %c0_i32_1 = arith.constant 0 : i32
    return %c0_i32, %c0_i32_0 : i32, i32
  }
  func.func @transform_8(%arg0: i32) -> i32 {
    %c0_i32 = arith.constant 0 : i32
    %c0_i32_0 = arith.constant 0 : i32
    return %c0_i32 : i32
  }
  func.func @transform_9(%arg0: i32) -> (i32, i32, i32) {
    %c0_i32 = arith.constant 0 : i32
    %c0_i32_0 = arith.constant 0 : i32
    %c0_i32_1 = arith.constant 0 : i32
    return %arg0, %c0_i32, %c0_i32_0 : i32, i32, i32
  }
}

</mosaic_0001>

<llo_original>
// kernel: tpu_custom_call.1
$region0: #{tpu_custom_call.1}
  #allocation0 [shape = 'u32[]', space=smem, size = 0x4, offset = 0x4, fixed_abs, tag = 'smem constant byte address 0x4 - core index']
  #allocation1 [shape = 'u32[72,128]{1,0:T(1,128)}', space=vmem, size = 0x9000, scoped, tag = 'internal scratch']
  #allocation2 [shape = 'f32[1]{0:T(128)S(6)}', space=smem, size = 0x200, scoped, tag = 'scoped memory for tpu_custom_call.1']
  %s0 = inlined_call_operand.vmem [shape: f32[128,128], index: 0, kind: input, shape index: {}]
  %s1 = inlined_call_operand.hbm [shape: f32[128,256], index: 1, kind: input, shape index: {}]
  %s2 = inlined_call_operand.vmem [shape: f32[1,256], index: 2, kind: input, shape index: {}]
  %s3 = inlined_call_operand.hbm [shape: f32[256,128], index: 3, kind: input, shape index: {}]
  %s4 = inlined_call_operand.vmem [shape: f32[1,128], index: 4, kind: input, shape index: {}]
  %s5 = inlined_call_operand.vmem [shape: f32[128,64], index: 5, kind: input, shape index: {}]
  %s6 = inlined_call_operand.vmem [shape: f32[1,64], index: 6, kind: input, shape index: {}]
  %s7 = inlined_call_operand.vmem [shape: f32[1,64], index: 7, kind: input, shape index: {}]
  %s8 = inlined_call_operand.<no memory space> [shape: f32[1], index: 8, kind: input, shape index: {}]
  %s9 = inlined_call_operand.hbm [shape: f32[1,1,128], index: 9, kind: output, shape index: {}]
  %s10 = sld [smem:[#allocation0]]
  $region54: #{tpu_custom_call.1} parent=0
    _
  %s12 = ssub.s32 1, %s10
  %s13 = scalar_select 0, %s12, %s10
  %14 = sst [smem:[#allocation2]] %s8
  $region1: #{tpu_custom_call.1} parent=0
    #allocation3 [shape = 'u8[131072]{0}', space=vmem, size = 0x20000, scoped, tag = 'input window, operand 1, single buffered']
    #allocation4 [shape = 's32[1]{0}', space=sflag, size = 0x4, scoped, tag = 'scoped memory for tpu_custom_call.1']
    #allocation5 [shape = 's32[1]{0}', space=sflag, size = 0x4, scoped, tag = 'scoped memory for tpu_custom_call.1']
    #allocation6 [shape = 'u8[131072]{0}', space=vmem, size = 0x20000, scoped, tag = 'input window, operand 3, single buffered']
    #allocation7 [shape = 's32[1]{0}', space=sflag, size = 0x4, scoped, tag = 'scoped memory for tpu_custom_call.1']
    #allocation8 [shape = 'u8[512]{0}', space=vmem, size = 0x400, scoped, tag = 'output window, operand 0, single buffered']
    %15 = vsyncpa [#allocation4], 0
    %16 = vsyncpa [#allocation7], 0
    %17 = vsyncpa [#allocation5], 0
    // Predicated region
    $region2: #{tpu_custom_call.1} parent=1 // pred_check
      _
    $region3: #{tpu_custom_call.1} parent=1 // pred_check_branch
      %19 = sbr.rel (0) target = $region5
    $region4: #{tpu_custom_call.1} parent=1 // pred_region
      _
    $region5: #{tpu_custom_call.1} parent=1 // pred_fallthru
      _
    // Predicated region
    $region6: #{tpu_custom_call.1} parent=1 // pred_check
      _
    $region7: #{tpu_custom_call.1} parent=1 // pred_check_branch
      %21 = sbr.rel (0) target = $region9
    $region8: #{tpu_custom_call.1} parent=1 // pred_region
      %23 = vsyncadd [#allocation4], 0
      %s24 = sshll.u32 %s1, 4
      %s25 = int_to_ptr.hbm [resolvable:$true] %s24
      %s26 = sshll.u32 [#allocation3], 4
      %s27 = int_to_ptr.vmem [resolvable:$true] %s26
      %32 = dma.hbm_to_vmem [thread:$0]  %s25, 4096, %s27, [#allocation4], 256, 256, 16
    $region9: #{tpu_custom_call.1} parent=1 // pred_fallthru
      _
    // Predicated region
    $region10: #{tpu_custom_call.1} parent=1 // pred_check
      _
    $region11: #{tpu_custom_call.1} parent=1 // pred_check_branch
      %34 = sbr.rel (0) target = $region13
    $region12: #{tpu_custom_call.1} parent=1 // pred_region
      _
    $region13: #{tpu_custom_call.1} parent=1 // pred_fallthru
      _
    // Predicated region
    $region14: #{tpu_custom_call.1} parent=1 // pred_check
      _
    $region15: #{tpu_custom_call.1} parent=1 // pred_check_branch
      %36 = sbr.rel (0) target = $region17
    $region16: #{tpu_custom_call.1} parent=1 // pred_region
      %38 = vsyncadd [#allocation7], 0
      %s39 = sshll.u32 %s3, 4
      %s40 = int_to_ptr.hbm [resolvable:$true] %s39
      %s41 = sshll.u32 [#allocation6], 4
      %s42 = int_to_ptr.vmem [resolvable:$true] %s41
      %47 = dma.hbm_to_vmem [thread:$0]  %s40, 4096, %s42, [#allocation7], 128, 128, 8
    $region17: #{tpu_custom_call.1} parent=1 // pred_fallthru
      _
    // Predicated region
    $region18: #{tpu_custom_call.1} parent=1 // pred_check
      _
    $region19: #{tpu_custom_call.1} parent=1 // pred_check_branch
      %49 = sbr.rel (0) target = $region21
    $region20: #{tpu_custom_call.1} parent=1 // pred_region
      _
    $region21: #{tpu_custom_call.1} parent=1 // pred_fallthru
      _
    // Predicated region
    $region22: #{tpu_custom_call.1} parent=1 // pred_check
      _
    $region23: #{tpu_custom_call.1} parent=1 // pred_check_branch
      %51 = sbr.rel (0) target = $region25
    $region24: #{tpu_custom_call.1} parent=1 // pred_region
      _
    $region25: #{tpu_custom_call.1} parent=1 // pred_fallthru
      _
    // Predicated region
    $region26: #{tpu_custom_call.1} parent=1 // pred_check
      _
    $region27: #{tpu_custom_call.1} parent=1 // pred_check_branch
      %53 = sbr.rel (0) target = $region29
    $region28: #{tpu_custom_call.1} parent=1 // pred_region
      _
    $region29: #{tpu_custom_call.1} parent=1 // pred_fallthru
      _
    // Predicated region
    $region30: #{tpu_custom_call.1} parent=1 // pred_check
      _
    $region31: #{tpu_custom_call.1} parent=1 // pred_check_branch
      %55 = sbr.rel (0) target = $region33
    $region32: #{tpu_custom_call.1} parent=1 // pred_region
      _
    $region33: #{tpu_custom_call.1} parent=1 // pred_fallthru
      _
    // Predicated region
    $region34: #{tpu_custom_call.1} parent=1 // pred_check
      _
    $region35: #{tpu_custom_call.1} parent=1 // pred_check_branch
      %57 = sbr.rel (0) target = $region37
    $region36: #{tpu_custom_call.1} parent=1 // pred_region
      _
    $region37: #{tpu_custom_call.1} parent=1 // pred_fallthru
      _
    // Predicated region
    $region38: #{tpu_custom_call.1} parent=1 // pred_check
      _
    $region39: #{tpu_custom_call.1} parent=1 // pred_check_branch
      %59 = sbr.rel (0) target = $region41
    $region40: #{tpu_custom_call.1} parent=1 // pred_region
      %61 = dma.done [#allocation4], 4096
    $region41: #{tpu_custom_call.1} parent=1 // pred_fallthru
      _
    // Predicated region
    $region42: #{tpu_custom_call.1} parent=1 // pred_check
      _
    $region43: #{tpu_custom_call.1} parent=1 // pred_check_branch
      %63 = sbr.rel (0) target = $region45
    $region44: #{tpu_custom_call.1} parent=1 // pred_region
      %65 = dma.done [#allocation7], 4096
    $region45: #{tpu_custom_call.1} parent=1 // pred_fallthru
      _
    %v66 = vld [vmem:[%s0] sm:$0xff]
    %v67 = vld [vmem:[%s0 + $0x8] sm:$0xff]
    %v68 = vld [vmem:[%s0 + $0x10] sm:$0xff]
    %v69 = vld [vmem:[%s0 + $0x18] sm:$0xff]
    %v70 = vld [vmem:[%s0 + $0x20] sm:$0xff]
    %v71 = vld [vmem:[%s0 + $0x28] sm:$0xff]
    %v72 = vld [vmem:[%s0 + $0x30] sm:$0xff]
    %v73 = vld [vmem:[%s0 + $0x38] sm:$0xff]
    %v74 = vld [vmem:[%s0 + $0x40] sm:$0xff]
    %v75 = vld [vmem:[%s0 + $0x48] sm:$0xff]
    %v76 = vld [vmem:[%s0 + $0x50] sm:$0xff]
    %v77 = vld [vmem:[%s0 + $0x58] sm:$0xff]
    %v78 = vld [vmem:[%s0 + $0x60] sm:$0xff]
    %v79 = vld [vmem:[%s0 + $0x68] sm:$0xff]
    %v80 = vld [vmem:[%s0 + $0x70] sm:$0xff]
    %v81 = vld [vmem:[%s0 + $0x78] sm:$0xff]
    %v82 = vld [vmem:[#allocation3] sm:$0xff]
    %v83 = vld [vmem:[#allocation3 + $0x8] sm:$0xff]
    %v84 = vld [vmem:[#allocation3 + $0x10] sm:$0xff]
    %v85 = vld [vmem:[#allocation3 + $0x18] sm:$0xff]
    %v86 = vld [vmem:[#allocation3 + $0x20] sm:$0xff]
    %v87 = vld [vmem:[#allocation3 + $0x28] sm:$0xff]
    %v88 = vld [vmem:[#allocation3 + $0x30] sm:$0xff]
    %v89 = vld [vmem:[#allocation3 + $0x38] sm:$0xff]
    %v90 = vld [vmem:[#allocation3 + $0x40] sm:$0xff]
    %v91 = vld [vmem:[#allocation3 + $0x48] sm:$0xff]
    %v92 = vld [vmem:[#allocation3 + $0x50] sm:$0xff]
    %v93 = vld [vmem:[#allocation3 + $0x58] sm:$0xff]
    %v94 = vld [vmem:[#allocation3 + $0x60] sm:$0xff]
    %v95 = vld [vmem:[#allocation3 + $0x68] sm:$0xff]
    %v96 = vld [vmem:[#allocation3 + $0x70] sm:$0xff]
    %v97 = vld [vmem:[#allocation3 + $0x78] sm:$0xff]
    %v98 = vld [vmem:[#allocation3 + $0x80] sm:$0xff]
    %v99 = vld [vmem:[#allocation3 + $0x88] sm:$0xff]
    %v100 = vld [vmem:[#allocation3 + $0x90] sm:$0xff]
    %v101 = vld [vmem:[#allocation3 + $0x98] sm:$0xff]
    %v102 = vld [vmem:[#allocation3 + $0xa0] sm:$0xff]
    %v103 = vld [vmem:[#allocation3 + $0xa8] sm:$0xff]
    %v104 = vld [vmem:[#allocation3 + $0xb0] sm:$0xff]
    %v105 = vld [vmem:[#allocation3 + $0xb8] sm:$0xff]
    %v106 = vld [vmem:[#allocation3 + $0xc0] sm:$0xff]
    %v107 = vld [vmem:[#allocation3 + $0xc8] sm:$0xff]
    %v108 = vld [vmem:[#allocation3 + $0xd0] sm:$0xff]
    %v109 = vld [vmem:[#allocation3 + $0xd8] sm:$0xff]
    %v110 = vld [vmem:[#allocation3 + $0xe0] sm:$0xff]
    %v111 = vld [vmem:[#allocation3 + $0xe8] sm:$0xff]
    %v112 = vld [vmem:[#allocation3 + $0xf0] sm:$0xff]
    %v113 = vld [vmem:[#allocation3 + $0xf8] sm:$0xff]
    %v114 = vld [vmem:[%s2] sm:$0x3]
    %v116 = vperm.slane %v114, 0
    %v117 = vperm.slane %v114, 1
    %120 = vmatpush.msra.mxu0 %v112
    %121 = vmatpush.msra.mxu0 %v110
    %122 = vmatpush.msra.mxu0 %v108
    %123 = vmatpush.msra.mxu0 %v106
    %124 = vmatpush.msra.mxu0 %v104
    %125 = vmatpush.msra.mxu0 %v102
    %126 = vmatpush.msra.mxu0 %v100
    %127 = vmatpush.msra.mxu0 %v98
    %128 = vmatpush.msra.mxu0 %v96
    %129 = vmatpush.msra.mxu0 %v94
    %130 = vmatpush.msra.mxu0 %v92
    %131 = vmatpush.msra.mxu0 %v90
    %132 = vmatpush.msra.mxu0 %v88
    %133 = vmatpush.msra.mxu0 %v86
    %134 = vmatpush.msra.mxu0 %v84
    %135 = vmatpush.msra.mxu0 %v82
    %136 = vmatmul.f32.gmra.mxu0 %v66
    %v137 = vpop.f32.mrf.mxu0
    %v138 = vadd.f32 %v116, %v137
    %139 = vmatmul.f32.gmra.mxu0 %v67
    %v140 = vpop.f32.mrf.mxu0
    %v141 = vadd.f32 %v116, %v140
    %142 = vmatmul.f32.gmra.mxu0 %v68
    %v143 = vpop.f32.mrf.mxu0
    %v144 = vadd.f32 %v116, %v143
    %145 = vmatmul.f32.gmra.mxu0 %v69
    %v146 = vpop.f32.mrf.mxu0
    %v147 = vadd.f32 %v116, %v146
    %148 = vmatmul.f32.gmra.mxu0 %v70
    %v149 = vpop.f32.mrf.mxu0
    %v150 = vadd.f32 %v116, %v149
    %151 = vmatmul.f32.gmra.mxu0 %v71
    %v152 = vpop.f32.mrf.mxu0
    %v153 = vadd.f32 %v116, %v152
    %154 = vmatmul.f32.gmra.mxu0 %v72
    %v155 = vpop.f32.mrf.mxu0
    %v156 = vadd.f32 %v116, %v155
    %157 = vmatmul.f32.gmra.mxu0 %v73
    %v158 = vpop.f32.mrf.mxu0
    %v159 = vadd.f32 %v116, %v158
    %160 = vmatmul.f32.gmra.mxu0 %v74
    %v161 = vpop.f32.mrf.mxu0
    %v162 = vadd.f32 %v116, %v161
    %163 = vmatmul.f32.gmra.mxu0 %v75
    %v164 = vpop.f32.mrf.mxu0
    %v165 = vadd.f32 %v116, %v164
    %166 = vmatmul.f32.gmra.mxu0 %v76
    %v167 = vpop.f32.mrf.mxu0
    %v168 = vadd.f32 %v116, %v167
    %169 = vmatmul.f32.gmra.mxu0 %v77
    %v170 = vpop.f32.mrf.mxu0
    %v171 = vadd.f32 %v116, %v170
    %172 = vmatmul.f32.gmra.mxu0 %v78
    %v173 = vpop.f32.mrf.mxu0
    %v174 = vadd.f32 %v116, %v173
    %175 = vmatmul.f32.gmra.mxu0 %v79
    %v176 = vpop.f32.mrf.mxu0
    %v177 = vadd.f32 %v116, %v176
    %178 = vmatmul.f32.gmra.mxu0 %v80
    %v179 = vpop.f32.mrf.mxu0
    %v180 = vadd.f32 %v116, %v179
    %181 = vmatmul.f32.gmra.mxu0 %v81
    %v182 = vpop.f32.mrf.mxu0
    %v183 = vadd.f32 %v116, %v182
    %184 = vdwg.mxu0
    %185 = vmatpush.msra.mxu0 %v113
    %186 = vmatpush.msra.mxu0 %v111
    %187 = vmatpush.msra.mxu0 %v109
    %188 = vmatpush.msra.mxu0 %v107
    %189 = vmatpush.msra.mxu0 %v105
    %190 = vmatpush.msra.mxu0 %v103
    %191 = vmatpush.msra.mxu0 %v101
    %192 = vmatpush.msra.mxu0 %v99
    %193 = vmatpush.msra.mxu0 %v97
    %194 = vmatpush.msra.mxu0 %v95
    %195 = vmatpush.msra.mxu0 %v93
    %196 = vmatpush.msra.mxu0 %v91
    %197 = vmatpush.msra.mxu0 %v89
    %198 = vmatpush.msra.mxu0 %v87
    %199 = vmatpush.msra.mxu0 %v85
    %200 = vmatpush.msra.mxu0 %v83
    %201 = vmatmul.f32.gmra.mxu0 %v66
    %v202 = vpop.f32.mrf.mxu0
    %v203 = vadd.f32 %v117, %v202
    %204 = vmatmul.f32.gmra.mxu0 %v67
    %v205 = vpop.f32.mrf.mxu0
    %v206 = vadd.f32 %v117, %v205
    %207 = vmatmul.f32.gmra.mxu0 %v68
    %v208 = vpop.f32.mrf.mxu0
    %v209 = vadd.f32 %v117, %v208
    %210 = vmatmul.f32.gmra.mxu0 %v69
    %v211 = vpop.f32.mrf.mxu0
    %v212 = vadd.f32 %v117, %v211
    %213 = vmatmul.f32.gmra.mxu0 %v70
    %v214 = vpop.f32.mrf.mxu0
    %v215 = vadd.f32 %v117, %v214
    %216 = vmatmul.f32.gmra.mxu0 %v71
    %v217 = vpop.f32.mrf.mxu0
    %v218 = vadd.f32 %v117, %v217
    %219 = vmatmul.f32.gmra.mxu0 %v72
    %v220 = vpop.f32.mrf.mxu0
    %v221 = vadd.f32 %v117, %v220
    %222 = vmatmul.f32.gmra.mxu0 %v73
    %v223 = vpop.f32.mrf.mxu0
    %v224 = vadd.f32 %v117, %v223
    %225 = vmatmul.f32.gmra.mxu0 %v74
    %v226 = vpop.f32.mrf.mxu0
    %v227 = vadd.f32 %v117, %v226
    %228 = vmatmul.f32.gmra.mxu0 %v75
    %v229 = vpop.f32.mrf.mxu0
    %v230 = vadd.f32 %v117, %v229
    %231 = vmatmul.f32.gmra.mxu0 %v76
    %v232 = vpop.f32.mrf.mxu0
    %v233 = vadd.f32 %v117, %v232
    %234 = vmatmul.f32.gmra.mxu0 %v77
    %v235 = vpop.f32.mrf.mxu0
    %v236 = vadd.f32 %v117, %v235
    %237 = vmatmul.f32.gmra.mxu0 %v78
    %v238 = vpop.f32.mrf.mxu0
    %v239 = vadd.f32 %v117, %v238
    %240 = vmatmul.f32.gmra.mxu0 %v79
    %v241 = vpop.f32.mrf.mxu0
    %v242 = vadd.f32 %v117, %v241
    %243 = vmatmul.f32.gmra.mxu0 %v80
    %v244 = vpop.f32.mrf.mxu0
    %v245 = vadd.f32 %v117, %v244
    %246 = vmatmul.f32.gmra.mxu0 %v81
    %v247 = vpop.f32.mrf.mxu0
    %v248 = vadd.f32 %v117, %v247
    %249 = vdwg.mxu0
    %v250 = vmax.f32 %v138, 0.0
    %v251 = vmax.f32 %v203, 0.0
    %v252 = vmax.f32 %v141, 0.0
    %v253 = vmax.f32 %v206, 0.0
    %v254 = vmax.f32 %v144, 0.0
    %v255 = vmax.f32 %v209, 0.0
    %v256 = vmax.f32 %v147, 0.0
    %v257 = vmax.f32 %v212, 0.0
    %v258 = vmax.f32 %v150, 0.0
    %v259 = vmax.f32 %v215, 0.0
    %v260 = vmax.f32 %v153, 0.0
    %v261 = vmax.f32 %v218, 0.0
    %v262 = vmax.f32 %v156, 0.0
    %v263 = vmax.f32 %v221, 0.0
    %v264 = vmax.f32 %v159, 0.0
    %v265 = vmax.f32 %v224, 0.0
    %v266 = vmax.f32 %v162, 0.0
    %v267 = vmax.f32 %v227, 0.0
    %v268 = vmax.f32 %v165, 0.0
    %v269 = vmax.f32 %v230, 0.0
    %v270 = vmax.f32 %v168, 0.0
    %v271 = vmax.f32 %v233, 0.0
    %v272 = vmax.f32 %v171, 0.0
    %v273 = vmax.f32 %v236, 0.0
    %v274 = vmax.f32 %v174, 0.0
    %v275 = vmax.f32 %v239, 0.0
    %v276 = vmax.f32 %v177, 0.0
    %v277 = vmax.f32 %v242, 0.0
    %v278 = vmax.f32 %v180, 0.0
    %v279 = vmax.f32 %v245, 0.0
    %v280 = vmax.f32 %v183, 0.0
    %v281 = vmax.f32 %v248, 0.0
    %v282 = vld [vmem:[#allocation6] sm:$0xff]
    %v283 = vld [vmem:[#allocation6 + $0x8] sm:$0xff]
    %v284 = vld [vmem:[#allocation6 + $0x10] sm:$0xff]
    %v285 = vld [vmem:[#allocation6 + $0x18] sm:$0xff]
    %v286 = vld [vmem:[#allocation6 + $0x20] sm:$0xff]
    %v287 = vld [vmem:[#allocation6 + $0x28] sm:$0xff]
    %v288 = vld [vmem:[#allocation6 + $0x30] sm:$0xff]
    %v289 = vld [vmem:[#allocation6 + $0x38] sm:$0xff]
    %v290 = vld [vmem:[#allocation6 + $0x40] sm:$0xff]
    %v291 = vld [vmem:[#allocation6 + $0x48] sm:$0xff]
    %v292 = vld [vmem:[#allocation6 + $0x50] sm:$0xff]
    %v293 = vld [vmem:[#allocation6 + $0x58] sm:$0xff]
    %v294 = vld [vmem:[#allocation6 + $0x60] sm:$0xff]
    %v295 = vld [vmem:[#allocation6 + $0x68] sm:$0xff]
    %v296 = vld [vmem:[#allocation6 + $0x70] sm:$0xff]
    %v297 = vld [vmem:[#allocation6 + $0x78] sm:$0xff]
    %v298 = vld [vmem:[#allocation6 + $0x80] sm:$0xff]
    %v299 = vld [vmem:[#allocation6 + $0x88] sm:$0xff]
    %v300 = vld [vmem:[#allocation6 + $0x90] sm:$0xff]
    %v301 = vld [vmem:[#allocation6 + $0x98] sm:$0xff]
    %v302 = vld [vmem:[#allocation6 + $0xa0] sm:$0xff]
    %v303 = vld [vmem:[#allocation6 + $0xa8] sm:$0xff]
    %v304 = vld [vmem:[#allocation6 + $0xb0] sm:$0xff]
    %v305 = vld [vmem:[#allocation6 + $0xb8] sm:$0xff]
    %v306 = vld [vmem:[#allocation6 + $0xc0] sm:$0xff]
    %v307 = vld [vmem:[#allocation6 + $0xc8] sm:$0xff]
    %v308 = vld [vmem:[#allocation6 + $0xd0] sm:$0xff]
    %v309 = vld [vmem:[#allocation6 + $0xd8] sm:$0xff]
    %v310 = vld [vmem:[#allocation6 + $0xe0] sm:$0xff]
    %v311 = vld [vmem:[#allocation6 + $0xe8] sm:$0xff]
    %v312 = vld [vmem:[#allocation6 + $0xf0] sm:$0xff]
    %v313 = vld [vmem:[#allocation6 + $0xf8] sm:$0xff]
    %v314 = vld [vmem:[%s4] sm:$0x1]
    %v316 = vperm.slane %v314, 0
    %318 = vmatpush.msra.mxu0 %v297
    %319 = vmatpush.msra.mxu0 %v296
    %320 = vmatpush.msra.mxu0 %v295
    %321 = vmatpush.msra.mxu0 %v294
    %322 = vmatpush.msra.mxu0 %v293
    %323 = vmatpush.msra.mxu0 %v292
    %324 = vmatpush.msra.mxu0 %v291
    %325 = vmatpush.msra.mxu0 %v290
    %326 = vmatpush.msra.mxu0 %v289
    %327 = vmatpush.msra.mxu0 %v288
    %328 = vmatpush.msra.mxu0 %v287
    %329 = vmatpush.msra.mxu0 %v286
    %330 = vmatpush.msra.mxu0 %v285
    %331 = vmatpush.msra.mxu0 %v284
    %332 = vmatpush.msra.mxu0 %v283
    %333 = vmatpush.msra.mxu0 %v282
    %334 = vmatmul.f32.gmra.mxu0 %v250
    %v335 = vpop.f32.mrf.mxu0
    %v336 = vadd.f32 %v316, %v335
    %337 = vmatmul.f32.gmra.mxu0 %v252
    %v338 = vpop.f32.mrf.mxu0
    %v339 = vadd.f32 %v316, %v338
    %340 = vmatmul.f32.gmra.mxu0 %v254
    %v341 = vpop.f32.mrf.mxu0
    %v342 = vadd.f32 %v316, %v341
    %343 = vmatmul.f32.gmra.mxu0 %v256
    %v344 = vpop.f32.mrf.mxu0
    %v345 = vadd.f32 %v316, %v344
    %346 = vmatmul.f32.gmra.mxu0 %v258
    %v347 = vpop.f32.mrf.mxu0
    %v348 = vadd.f32 %v316, %v347
    %349 = vmatmul.f32.gmra.mxu0 %v260
    %v350 = vpop.f32.mrf.mxu0
    %v351 = vadd.f32 %v316, %v350
    %352 = vmatmul.f32.gmra.mxu0 %v262
    %v353 = vpop.f32.mrf.mxu0
    %v354 = vadd.f32 %v316, %v353
    %355 = vmatmul.f32.gmra.mxu0 %v264
    %v356 = vpop.f32.mrf.mxu0
    %v357 = vadd.f32 %v316, %v356
    %358 = vmatmul.f32.gmra.mxu0 %v266
    %v359 = vpop.f32.mrf.mxu0
    %v360 = vadd.f32 %v316, %v359
    %361 = vmatmul.f32.gmra.mxu0 %v268
    %v362 = vpop.f32.mrf.mxu0
    %v363 = vadd.f32 %v316, %v362
    %364 = vmatmul.f32.gmra.mxu0 %v270
    %v365 = vpop.f32.mrf.mxu0
    %v366 = vadd.f32 %v316, %v365
    %367 = vmatmul.f32.gmra.mxu0 %v272
    %v368 = vpop.f32.mrf.mxu0
    %v369 = vadd.f32 %v316, %v368
    %370 = vmatmul.f32.gmra.mxu0 %v274
    %v371 = vpop.f32.mrf.mxu0
    %v372 = vadd.f32 %v316, %v371
    %373 = vmatmul.f32.gmra.mxu0 %v276
    %v374 = vpop.f32.mrf.mxu0
    %v375 = vadd.f32 %v316, %v374
    %376 = vmatmul.f32.gmra.mxu0 %v278
    %v377 = vpop.f32.mrf.mxu0
    %v378 = vadd.f32 %v316, %v377
    %379 = vmatmul.f32.gmra.mxu0 %v280
    %v380 = vpop.f32.mrf.mxu0
    %v381 = vadd.f32 %v316, %v380
    %382 = vdwg.mxu0
    %383 = vmatpush.msra.mxu0 %v313
    %384 = vmatpush.msra.mxu0 %v312
    %385 = vmatpush.msra.mxu0 %v311
    %386 = vmatpush.msra.mxu0 %v310
    %387 = vmatpush.msra.mxu0 %v309
    %388 = vmatpush.msra.mxu0 %v308
    %389 = vmatpush.msra.mxu0 %v307
    %390 = vmatpush.msra.mxu0 %v306
    %391 = vmatpush.msra.mxu0 %v305
    %392 = vmatpush.msra.mxu0 %v304
    %393 = vmatpush.msra.mxu0 %v303
    %394 = vmatpush.msra.mxu0 %v302
    %395 = vmatpush.msra.mxu0 %v301
    %396 = vmatpush.msra.mxu0 %v300
    %397 = vmatpush.msra.mxu0 %v299
    %398 = vmatpush.msra.mxu0 %v298
    %399 = vmatmul.f32.gmra.mxu0 %v251
    %v400 = vpop.f32.mrf.mxu0
    %v401 = vadd.f32 %v336, %v400
    %402 = vmatmul.f32.gmra.mxu0 %v253
    %v403 = vpop.f32.mrf.mxu0
    %v404 = vadd.f32 %v339, %v403
    %405 = vmatmul.f32.gmra.mxu0 %v255
    %v406 = vpop.f32.mrf.mxu0
    %v407 = vadd.f32 %v342, %v406
    %408 = vmatmul.f32.gmra.mxu0 %v257
    %v409 = vpop.f32.mrf.mxu0
    %v410 = vadd.f32 %v345, %v409
    %411 = vmatmul.f32.gmra.mxu0 %v259
    %v412 = vpop.f32.mrf.mxu0
    %v413 = vadd.f32 %v348, %v412
    %414 = vmatmul.f32.gmra.mxu0 %v261
    %v415 = vpop.f32.mrf.mxu0
    %v416 = vadd.f32 %v351, %v415
    %417 = vmatmul.f32.gmra.mxu0 %v263
    %v418 = vpop.f32.mrf.mxu0
    %v419 = vadd.f32 %v354, %v418
    %420 = vmatmul.f32.gmra.mxu0 %v265
    %v421 = vpop.f32.mrf.mxu0
    %v422 = vadd.f32 %v357, %v421
    %423 = vmatmul.f32.gmra.mxu0 %v267
    %v424 = vpop.f32.mrf.mxu0
    %v425 = vadd.f32 %v360, %v424
    %426 = vmatmul.f32.gmra.mxu0 %v269
    %v427 = vpop.f32.mrf.mxu0
    %v428 = vadd.f32 %v363, %v427
    %429 = vmatmul.f32.gmra.mxu0 %v271
    %v430 = vpop.f32.mrf.mxu0
    %v431 = vadd.f32 %v366, %v430
    %432 = vmatmul.f32.gmra.mxu0 %v273
    %v433 = vpop.f32.mrf.mxu0
    %v434 = vadd.f32 %v369, %v433
    %435 = vmatmul.f32.gmra.mxu0 %v275
    %v436 = vpop.f32.mrf.mxu0
    %v437 = vadd.f32 %v372, %v436
    %438 = vmatmul.f32.gmra.mxu0 %v277
    %v439 = vpop.f32.mrf.mxu0
    %v440 = vadd.f32 %v375, %v439
    %441 = vmatmul.f32.gmra.mxu0 %v279
    %v442 = vpop.f32.mrf.mxu0
    %v443 = vadd.f32 %v378, %v442
    %444 = vmatmul.f32.gmra.mxu0 %v281
    %v445 = vpop.f32.mrf.mxu0
    %v446 = vadd.f32 %v381, %v445
    %447 = vdwg.mxu0
    %v448 = vmax.f32 %v401, 0.0
    %v449 = vmax.f32 %v404, 0.0
    %v450 = vmax.f32 %v407, 0.0
    %v451 = vmax.f32 %v410, 0.0
    %v452 = vmax.f32 %v413, 0.0
    %v453 = vmax.f32 %v416, 0.0
    %v454 = vmax.f32 %v419, 0.0
    %v455 = vmax.f32 %v422, 0.0
    %v456 = vmax.f32 %v425, 0.0
    %v457 = vmax.f32 %v428, 0.0
    %v458 = vmax.f32 %v431, 0.0
    %v459 = vmax.f32 %v434, 0.0
    %v460 = vmax.f32 %v437, 0.0
    %v461 = vmax.f32 %v440, 0.0
    %v462 = vmax.f32 %v443, 0.0
    %v463 = vmax.f32 %v446, 0.0
    %v464 = vld [vmem:[%s5] sm:$0xff]
    %v465 = vld [vmem:[%s5 + $0x8] sm:$0xff]
    %v466 = vld [vmem:[%s5 + $0x10] sm:$0xff]
    %v467 = vld [vmem:[%s5 + $0x18] sm:$0xff]
    %v468 = vld [vmem:[%s5 + $0x20] sm:$0xff]
    %v469 = vld [vmem:[%s5 + $0x28] sm:$0xff]
    %v470 = vld [vmem:[%s5 + $0x30] sm:$0xff]
    %v471 = vld [vmem:[%s5 + $0x38] sm:$0xff]
    %v472 = vld [vmem:[%s5 + $0x40] sm:$0xff]
    %v473 = vld [vmem:[%s5 + $0x48] sm:$0xff]
    %v474 = vld [vmem:[%s5 + $0x50] sm:$0xff]
    %v475 = vld [vmem:[%s5 + $0x58] sm:$0xff]
    %v476 = vld [vmem:[%s5 + $0x60] sm:$0xff]
    %v477 = vld [vmem:[%s5 + $0x68] sm:$0xff]
    %v478 = vld [vmem:[%s5 + $0x70] sm:$0xff]
    %v479 = vld [vmem:[%s5 + $0x78] sm:$0xff]
    %v480 = vld [vmem:[%s6] sm:$0x1]
    %v482 = vperm.slane %v480, 0
    %484 = vmatpush.msra.mxu0 %v479
    %485 = vmatpush.msra.mxu0 %v478
    %486 = vmatpush.msra.mxu0 %v477
    %487 = vmatpush.msra.mxu0 %v476
    %488 = vmatpush.msra.mxu0 %v475
    %489 = vmatpush.msra.mxu0 %v474
    %490 = vmatpush.msra.mxu0 %v473
    %491 = vmatpush.msra.mxu0 %v472
    %492 = vmatpush.msra.mxu0 %v471
    %493 = vmatpush.msra.mxu0 %v470
    %494 = vmatpush.msra.mxu0 %v469
    %495 = vmatpush.msra.mxu0 %v468
    %496 = vmatpush.msra.mxu0 %v467
    %497 = vmatpush.msra.mxu0 %v466
    %498 = vmatpush.msra.mxu0 %v465
    %499 = vmatpush.msra.mxu0 %v464
    %500 = vmatmul.f32.gmra.mxu0 %v448
    %v501 = vpop.f32.mrf.mxu0
    %v502 = vadd.f32 %v482, %v501
    %503 = vmatmul.f32.gmra.mxu0 %v449
    %v504 = vpop.f32.mrf.mxu0
    %v505 = vadd.f32 %v482, %v504
    %506 = vmatmul.f32.gmra.mxu0 %v450
    %v507 = vpop.f32.mrf.mxu0
    %v508 = vadd.f32 %v482, %v507
    %509 = vmatmul.f32.gmra.mxu0 %v451
    %v510 = vpop.f32.mrf.mxu0
    %v511 = vadd.f32 %v482, %v510
    %512 = vmatmul.f32.gmra.mxu0 %v452
    %v513 = vpop.f32.mrf.mxu0
    %v514 = vadd.f32 %v482, %v513
    %515 = vmatmul.f32.gmra.mxu0 %v453
    %v516 = vpop.f32.mrf.mxu0
    %v517 = vadd.f32 %v482, %v516
    %518 = vmatmul.f32.gmra.mxu0 %v454
    %v519 = vpop.f32.mrf.mxu0
    %v520 = vadd.f32 %v482, %v519
    %521 = vmatmul.f32.gmra.mxu0 %v455
    %v522 = vpop.f32.mrf.mxu0
    %v523 = vadd.f32 %v482, %v522
    %524 = vmatmul.f32.gmra.mxu0 %v456
    %v525 = vpop.f32.mrf.mxu0
    %v526 = vadd.f32 %v482, %v525
    %527 = vmatmul.f32.gmra.mxu0 %v457
    %v528 = vpop.f32.mrf.mxu0
    %v529 = vadd.f32 %v482, %v528
    %530 = vmatmul.f32.gmra.mxu0 %v458
    %v531 = vpop.f32.mrf.mxu0
    %v532 = vadd.f32 %v482, %v531
    %533 = vmatmul.f32.gmra.mxu0 %v459
    %v534 = vpop.f32.mrf.mxu0
    %v535 = vadd.f32 %v482, %v534
    %536 = vmatmul.f32.gmra.mxu0 %v460
    %v537 = vpop.f32.mrf.mxu0
    %v538 = vadd.f32 %v482, %v537
    %539 = vmatmul.f32.gmra.mxu0 %v461
    %v540 = vpop.f32.mrf.mxu0
    %v541 = vadd.f32 %v482, %v540
    %542 = vmatmul.f32.gmra.mxu0 %v462
    %v543 = vpop.f32.mrf.mxu0
    %v544 = vadd.f32 %v482, %v543
    %545 = vmatmul.f32.gmra.mxu0 %v463
    %v546 = vpop.f32.mrf.mxu0
    %v547 = vadd.f32 %v482, %v546
    %548 = vdwg.mxu0
    %v549 = vmax.f32 %v502, 0.0
    %v550 = vmax.f32 %v505, 0.0
    %v551 = vmax.f32 %v508, 0.0
    %v552 = vmax.f32 %v511, 0.0
    %v553 = vmax.f32 %v514, 0.0
    %v554 = vmax.f32 %v517, 0.0
    %v555 = vmax.f32 %v520, 0.0
    %v556 = vmax.f32 %v523, 0.0
    %v557 = vmax.f32 %v526, 0.0
    %v558 = vmax.f32 %v529, 0.0
    %v559 = vmax.f32 %v532, 0.0
    %v560 = vmax.f32 %v535, 0.0
    %v561 = vmax.f32 %v538, 0.0
    %v562 = vmax.f32 %v541, 0.0
    %v563 = vmax.f32 %v544, 0.0
    %v564 = vmax.f32 %v547, 0.0
    %v565 = vld [vmem:[%s7] sm:$0x1]
    %v567 = vperm.slane %v565, 0
    %v569 = vmul.f32 %v549, %v567
    %v570 = vmul.f32 %v550, %v567
    %v571 = vmul.f32 %v551, %v567
    %v572 = vmul.f32 %v552, %v567
    %v573 = vmul.f32 %v553, %v567
    %v574 = vmul.f32 %v554, %v567
    %v575 = vmul.f32 %v555, %v567
    %v576 = vmul.f32 %v556, %v567
    %v577 = vmul.f32 %v557, %v567
    %v578 = vmul.f32 %v558, %v567
    %v579 = vmul.f32 %v559, %v567
    %v580 = vmul.f32 %v560, %v567
    %v581 = vmul.f32 %v561, %v567
    %v582 = vmul.f32 %v562, %v567
    %v583 = vmul.f32 %v563, %v567
    %v584 = vmul.f32 %v564, %v567
    %vm585 = vcmask 523264
    %v586 = vsel %vm585, %v569, 0.0
    %587 = vadd.xlane.f32.xlu0 %v586
    %v588 = vpop.xlane.xlu0 %587
    %v589 = vsel %vm585, %v570, 0.0
    %590 = vadd.xlane.f32.xlu0 %v589
    %v591 = vpop.xlane.xlu0 %590
    %v592 = vsel %vm585, %v571, 0.0
    %593 = vadd.xlane.f32.xlu0 %v592
    %v594 = vpop.xlane.xlu0 %593
    %v595 = vsel %vm585, %v572, 0.0
    %596 = vadd.xlane.f32.xlu0 %v595
    %v597 = vpop.xlane.xlu0 %596
    %v598 = vsel %vm585, %v573, 0.0
    %599 = vadd.xlane.f32.xlu0 %v598
    %v600 = vpop.xlane.xlu0 %599
    %v601 = vsel %vm585, %v574, 0.0
    %602 = vadd.xlane.f32.xlu0 %v601
    %v603 = vpop.xlane.xlu0 %602
    %v604 = vsel %vm585, %v575, 0.0
    %605 = vadd.xlane.f32.xlu0 %v604
    %v606 = vpop.xlane.xlu0 %605
    %v607 = vsel %vm585, %v576, 0.0
    %608 = vadd.xlane.f32.xlu0 %v607
    %v609 = vpop.xlane.xlu0 %608
    %v610 = vsel %vm585, %v577, 0.0
    %611 = vadd.xlane.f32.xlu0 %v610
    %v612 = vpop.xlane.xlu0 %611
    %v613 = vsel %vm585, %v578, 0.0
    %614 = vadd.xlane.f32.xlu0 %v613
    %v615 = vpop.xlane.xlu0 %614
    %v616 = vsel %vm585, %v579, 0.0
    %617 = vadd.xlane.f32.xlu0 %v616
    %v618 = vpop.xlane.xlu0 %617
    %v619 = vsel %vm585, %v580, 0.0
    %620 = vadd.xlane.f32.xlu0 %v619
    %v621 = vpop.xlane.xlu0 %620
    %v622 = vsel %vm585, %v581, 0.0
    %623 = vadd.xlane.f32.xlu0 %v622
    %v624 = vpop.xlane.xlu0 %623
    %v625 = vsel %vm585, %v582, 0.0
    %626 = vadd.xlane.f32.xlu0 %v625
    %v627 = vpop.xlane.xlu0 %626
    %v628 = vsel %vm585, %v583, 0.0
    %629 = vadd.xlane.f32.xlu0 %v628
    %v630 = vpop.xlane.xlu0 %629
    %v631 = vsel %vm585, %v584, 0.0
    %632 = vadd.xlane.f32.xlu0 %v631
    %v633 = vpop.xlane.xlu0 %632
    %s634 = sld [smem:[#allocation2]]
    %v635 = vstv %s634
    %v636 = vadd.f32 %v588, %v635
    %v637 = vadd.f32 %v591, %v635
    %v638 = vadd.f32 %v594, %v635
    %v639 = vadd.f32 %v597, %v635
    %v640 = vadd.f32 %v600, %v635
    %v641 = vadd.f32 %v603, %v635
    %v642 = vadd.f32 %v606, %v635
    %v643 = vadd.f32 %v609, %v635
    %v644 = vadd.f32 %v612, %v635
    %v645 = vadd.f32 %v615, %v635
    %v646 = vadd.f32 %v618, %v635
    %v647 = vadd.f32 %v621, %v635
    %v648 = vadd.f32 %v624, %v635
    %v649 = vadd.f32 %v627, %v635
    %v650 = vadd.f32 %v630, %v635
    %v651 = vadd.f32 %v633, %v635
    %v668 = vlaneseq
    %v669 = vand.u32 %v668, 127
    %v670 = vperm.slane %v636, %v669
    %v671 = vadd.s32 %v669, 4294967288
    %v672 = vperm.slane %v637, %v671
    %vm673 = vcmask 130112
    %v674 = vsel %vm673, %v672, %v670
    %v675 = vadd.s32 %v669, 4294967280
    %v676 = vperm.slane %v638, %v675
    %vm677 = vcmask 195712
    %v678 = vsel %vm677, %v676, %v674
    %v679 = vadd.s32 %v669, 4294967272
    %v680 = vperm.slane %v639, %v679
    %vm681 = vcmask 261312
    %v682 = vsel %vm681, %v680, %v678
    %v683 = vadd.s32 %v669, 4294967264
    %v684 = vperm.slane %v640, %v683
    %vm685 = vcmask 326912
    %v686 = vsel %vm685, %v684, %v682
    %v687 = vadd.s32 %v669, 4294967256
    %v688 = vperm.slane %v641, %v687
    %vm689 = vcmask 392512
    %v690 = vsel %vm689, %v688, %v686
    %v691 = vadd.s32 %v669, 4294967248
    %v692 = vperm.slane %v642, %v691
    %vm693 = vcmask 458112
    %v694 = vsel %vm693, %v692, %v690
    %v695 = vadd.s32 %v669, 4294967240
    %v696 = vperm.slane %v643, %v695
    %vm697 = vcmask 523712
    %v698 = vsel %vm697, %v696, %v694
    %v699 = vadd.s32 %v669, 4294967232
    %v700 = vperm.slane %v644, %v699
    %vm701 = vcmask 589312
    %v702 = vsel %vm701, %v700, %v698
    %v703 = vadd.s32 %v669, 4294967224
    %v704 = vperm.slane %v645, %v703
    %vm705 = vcmask 654912
    %v706 = vsel %vm705, %v704, %v702
    %v707 = vadd.s32 %v669, 4294967216
    %v708 = vperm.slane %v646, %v707
    %vm709 = vcmask 720512
    %v710 = vsel %vm709, %v708, %v706
    %v711 = vadd.s32 %v669, 4294967208
    %v712 = vperm.slane %v647, %v711
    %vm713 = vcmask 786112
    %v714 = vsel %vm713, %v712, %v710
    %v715 = vadd.s32 %v669, 4294967200
    %v716 = vperm.slane %v648, %v715
    %vm717 = vcmask 851712
    %v718 = vsel %vm717, %v716, %v714
    %v719 = vadd.s32 %v669, 4294967192
    %v720 = vperm.slane %v649, %v719
    %vm721 = vcmask 917312
    %v722 = vsel %vm721, %v720, %v718
    %v723 = vadd.s32 %v669, 4294967184
    %v724 = vperm.slane %v650, %v723
    %vm725 = vcmask 982912
    %v726 = vsel %vm725, %v724, %v722
    %v727 = vadd.s32 %v669, 4294967176
    %v728 = vperm.slane %v651, %v727
    %vm729 = vcmask 1048512
    %v730 = vsel %vm729, %v728, %v726
    %732 = vst [vmem:[#allocation8] sm:$0x1] %v730
    // Predicated region
    $region46: #{tpu_custom_call.1} parent=1 // pred_check
      _
    $region47: #{tpu_custom_call.1} parent=1 // pred_check_branch
      %734 = sbr.rel (0) target = $region49
    $region48: #{tpu_custom_call.1} parent=1 // pred_region
      %736 = vsyncadd [#allocation5], 0
      %s738 = sshll.u32 [#allocation8], 4
      %s739 = int_to_ptr.vmem [resolvable:$true] %s738
      %s740 = sshll.u32 %s9, 4
      %s741 = int_to_ptr.hbm [resolvable:$true] %s740
      %743 = dma.vmem_to_hbm [thread:$0]  %s739, 16, %s741, [#allocation5]
    $region49: #{tpu_custom_call.1} parent=1 // pred_fallthru
      _
    // Predicated region
    $region50: #{tpu_custom_call.1} parent=1 // pred_check
      _
    $region51: #{tpu_custom_call.1} parent=1 // pred_check_branch
      %745 = sbr.rel (0) target = $region53
    $region52: #{tpu_custom_call.1} parent=1 // pred_region
      %747 = dma.done [#allocation5], 16
    $region53: #{tpu_custom_call.1} parent=1 // pred_fallthru
      _
    %748 = vsyncpa [#allocation4], 1
    %749 = vsyncpa [#allocation7], 1
    %750 = vsyncpa [#allocation5], 1

</llo_original>
